<compile_context>
chip_gen: v7x
topology: tpu7x:2x2x1
jax: 0.10.0
libtpu: 0.0.40
codegen_flags: <defaults>
</compile_context>

<pallas_src>
import functools

import jax
import jax.numpy as jnp
from jax.experimental import pallas as pl
from jax.experimental.pallas import tpu as pltpu


def _largest_divisor_leq(n, k):
    """Largest divisor of n that is <= k (k >= 1)."""
    k = int(min(n, max(1, k)))
    while n % k:
        k -= 1
    return k


def _localnorm_kernel(eps, x_ref, xn_ref, mean_ref, std_ref):
    # Block is (TN, C, THW): C on sublanes, THW on lanes, TN leading.
    x = x_ref[...].astype(jnp.float32)                        # (TN, C, THW)
    c = x.shape[1]
    mean = jnp.mean(x, axis=1, keepdims=True)                 # (TN, 1, THW)
    diff = x - mean
    # PyTorch x.std() is unbiased (divides by C-1); two-pass for stability.
    var = jnp.sum(diff * diff, axis=1, keepdims=True) * jnp.float32(1.0 / (c - 1))
    std = jnp.sqrt(var)                                       # (TN, 1, THW)
    # EUP reciprocal (exact) + broadcast multiply instead of per-element divide.
    inv = pl.reciprocal(std + jnp.float32(eps), approx=False)
    xn_ref[...] = (diff * inv).astype(xn_ref.dtype)
    mean_ref[...] = mean.astype(mean_ref.dtype)
    std_ref[...] = std.astype(std_ref.dtype)


def _pick_tiles(N, C, HW, itemsize):
    """Pick (TN, THW, n_hw_tiles) from a VMEM working-set budget.

    Per-element VMEM estimate: double-buffered input (2*itemsize) +
    double-buffered xn output (2*itemsize) + ~3 live f32 temporaries in the
    kernel body (x, diff, product) = 4*itemsize + 12 bytes.
    """
    bytes_per_elem = 4 * itemsize + 12
    budget = 28 * 1024 * 1024                     # ~28 MiB working set target
    elems_target = max(budget // bytes_per_elem, C * 128)

    if C * HW <= elems_target:
        # Whole spatial extent fits in one block; amortize step overhead over N.
        thw = HW
        n_hw_tiles = 1
        tn_cap = max(1, elems_target // (C * HW))
        tn = _largest_divisor_leq(N, tn_cap)
        # Keep >= 2 grid steps when possible so both v7x TensorCores get work.
        if tn == N and N >= 2:
            tn = _largest_divisor_leq(N, max(1, N // 2))
    else:
        # Large C*HW: one image row of channels per step, tile lanes.
        tn = 1
        lanes = max(128, ((elems_target // C) // 128) * 128)  # lane-dense tile
        thw = HW if lanes >= HW else lanes
        n_hw_tiles = pl.cdiv(HW, thw)
    return tn, thw, n_hw_tiles


def local_norm(x, eps=1e-5):
    """x: (N, C, H, W) NCHW, matching the PyTorch module.  Requires C >= 2."""
    N, C, H, W = x.shape
    assert C >= 2, "unbiased std (ddof=1) requires C >= 2"
    HW = H * W
    itemsize = jnp.dtype(x.dtype).itemsize

    tn, thw, n_hw_tiles = _pick_tiles(N, C, HW, itemsize)
    n_n_tiles = N // tn

    x3 = x.reshape(N, C, HW)  # contiguous reshape, no copy

    out_shapes = (
        jax.ShapeDtypeStruct((N, C, HW), x.dtype),   # x_norm
        jax.ShapeDtypeStruct((N, 1, HW), x.dtype),   # mean
        jax.ShapeDtypeStruct((N, 1, HW), x.dtype),   # std
    )

    cost = pl.CostEstimate(
        flops=5 * N * C * HW,
        transcendentals=2 * N * HW,                      # sqrt + reciprocal per lane
        bytes_accessed=(2 * N * C * HW + 2 * N * HW) * itemsize,
    )

    xn, mean, std = pl.pallas_call(
        functools.partial(_localnorm_kernel, eps),
        out_shape=out_shapes,
        grid_spec=pltpu.PrefetchScalarGridSpec(
            num_scalar_prefetch=0,
            grid=(n_n_tiles, n_hw_tiles),
            in_specs=[
                pl.BlockSpec((tn, C, thw), lambda n, h: (n, 0, h)),
            ],
            out_specs=[
                pl.BlockSpec((tn, C, thw), lambda n, h: (n, 0, h)),
                pl.BlockSpec((tn, 1, thw), lambda n, h: (n, 0, h)),
                pl.BlockSpec((tn, 1, thw), lambda n, h: (n, 0, h)),
            ],
        ),
        compiler_params=pltpu.CompilerParams(
            dimension_semantics=("parallel", "parallel"),
            vmem_limit_bytes=48 * 1024 * 1024,   # safe on v5e/v6e (128 MiB) and v7x (64 MiB)
        ),
        cost_estimate=cost,
    )(x3)

    return (
        xn.reshape(N, C, H, W),
        mean.reshape(N, 1, H, W),
        std.reshape(N, 1, H, W),
    )


def _reference(x, eps=1e-5):
    mean = jnp.mean(x, axis=1, keepdims=True)
    std = jnp.std(x, axis=1, keepdims=True, ddof=1)   # unbiased, like torch .std()
    x_norm = (x - mean) / (std + eps)
    return x_norm, mean, std


if __name__ == "__main__":
    key = jax.random.PRNGKey(0)
    x = jax.random.normal(key, (2, 4, 16, 16), dtype=jnp.float32)

    xn, mean, std = local_norm(x)
    jax.block_until_ready((xn, mean, std))

    xn_r, mean_r, std_r = _reference(x)
    assert jnp.allclose(xn, xn_r, atol=1e-4, rtol=1e-4)
    assert jnp.allclose(mean, mean_r, atol=1e-5, rtol=1e-5)
    assert jnp.allclose(std, std_r, atol=1e-5, rtol=1e-5)

    print("KERNEL_OK")
</pallas_src>

<mosaic_0001>
module attributes {stable_mosaic.version = 11 : i64} {
  func.func @_localnorm_kernel(%arg0: i32, %arg1: i32, %arg2: memref<1x4x256xf32, #tpu.memory_space<vmem>>, %arg3: memref<1x4x256xf32, #tpu.memory_space<vmem>>, %arg4: memref<1x1x256xf32, #tpu.memory_space<vmem>>, %arg5: memref<1x1x256xf32, #tpu.memory_space<vmem>>) attributes {dimension_semantics = [#tpu.dimension_semantics<parallel>, #tpu.dimension_semantics<parallel>], iteration_bounds = array<i64: 2, 1>, scalar_prefetch = 0 : i64, scratch_operands = 0 : i64, tpu.core_type = #tpu.core_type<tc>, window_params = [{transform_indices = @transform_0, window_bounds = array<i64: 1, 4, 256>}, {transform_indices = @transform_1, window_bounds = array<i64: 1, 4, 256>}, {transform_indices = @transform_2, window_bounds = array<i64: 1, 1, 256>}, {transform_indices = @transform_3, window_bounds = array<i64: 1, 1, 256>}]} {
    %c0 = arith.constant 0 : index
    %c0_0 = arith.constant 0 : index
    %c0_1 = arith.constant 0 : index
    %0 = vector.load %arg2[%c0, %c0_0, %c0_1] : memref<1x4x256xf32, #tpu.memory_space<vmem>>, vector<1x4x256xf32>
    %cst = arith.constant dense<0.000000e+00> : vector<1x256xf32>
    %1 = vector.multi_reduction <add>, %0, %cst [1] : vector<1x4x256xf32> to vector<1x256xf32>
    %2 = vector.shape_cast %1 : vector<1x256xf32> to vector<1x1x256xf32>
    %cst_2 = arith.constant 4.000000e+00 : f32
    %3 = vector.broadcast %cst_2 : f32 to vector<1x1x256xf32>
    %4 = arith.divf %2, %3 : vector<1x1x256xf32>
    %5 = vector.broadcast %4 : vector<1x1x256xf32> to vector<1x4x256xf32>
    %6 = arith.subf %0, %5 : vector<1x4x256xf32>
    %7 = arith.mulf %6, %6 : vector<1x4x256xf32>
    %cst_3 = arith.constant dense<0.000000e+00> : vector<1x256xf32>
    %8 = vector.multi_reduction <add>, %7, %cst_3 [1] : vector<1x4x256xf32> to vector<1x256xf32>
    %9 = vector.shape_cast %8 : vector<1x256xf32> to vector<1x1x256xf32>
    %cst_4 = arith.constant 0.333333343 : f32
    %10 = vector.broadcast %cst_4 : f32 to vector<1x1x256xf32>
    %11 = arith.mulf %9, %10 : vector<1x1x256xf32>
    %12 = math.sqrt %11 : vector<1x1x256xf32>
    %cst_5 = arith.constant 9.99999974E-6 : f32
    %13 = vector.broadcast %cst_5 : f32 to vector<1x1x256xf32>
    %14 = arith.addf %12, %13 : vector<1x1x256xf32>
    %15 = tpu.reciprocal %14 : vector<1x1x256xf32> -> vector<1x1x256xf32>
    %16 = vector.broadcast %15 : vector<1x1x256xf32> to vector<1x4x256xf32>
    %17 = arith.mulf %6, %16 : vector<1x4x256xf32>
    %c0_6 = arith.constant 0 : index
    %c0_7 = arith.constant 0 : index
    %c0_8 = arith.constant 0 : index
    %18 = vector.load %arg3[%c0_6, %c0_7, %c0_8] : memref<1x4x256xf32, #tpu.memory_space<vmem>>, vector<1x4x256xf32>
    tpu.vector_store %arg3[%c0_6, %c0_7, %c0_8], %17 {strides = array<i32>} : memref<1x4x256xf32, #tpu.memory_space<vmem>>, vector<1x4x256xf32>,
    %c0_9 = arith.constant 0 : index
    %c0_10 = arith.constant 0 : index
    %c0_11 = arith.constant 0 : index
    %19 = vector.load %arg4[%c0_9, %c0_10, %c0_11] : memref<1x1x256xf32, #tpu.memory_space<vmem>>, vector<1x1x256xf32>
    tpu.vector_store %arg4[%c0_9, %c0_10, %c0_11], %4 {strides = array<i32>} : memref<1x1x256xf32, #tpu.memory_space<vmem>>, vector<1x1x256xf32>,
    %c0_12 = arith.constant 0 : index
    %c0_13 = arith.constant 0 : index
    %c0_14 = arith.constant 0 : index
    %20 = vector.load %arg5[%c0_12, %c0_13, %c0_14] : memref<1x1x256xf32, #tpu.memory_space<vmem>>, vector<1x1x256xf32>
    tpu.vector_store %arg5[%c0_12, %c0_13, %c0_14], %12 {strides = array<i32>} : memref<1x1x256xf32, #tpu.memory_space<vmem>>, vector<1x1x256xf32>,
    return
  }
  func.func @transform_0(%arg0: i32, %arg1: i32) -> (i32, i32, i32) {
    %c0_i32 = arith.constant 0 : i32
    %c0_i32_0 = arith.constant 0 : i32
    return %arg0, %c0_i32, %arg1 : i32, i32, i32
  }
  func.func @transform_1(%arg0: i32, %arg1: i32) -> (i32, i32, i32) {
    %c0_i32 = arith.constant 0 : i32
    %c0_i32_0 = arith.constant 0 : i32
    return %arg0, %c0_i32, %arg1 : i32, i32, i32
  }
  func.func @transform_2(%arg0: i32, %arg1: i32) -> (i32, i32, i32) {
    %c0_i32 = arith.constant 0 : i32
    %c0_i32_0 = arith.constant 0 : i32
    return %arg0, %c0_i32, %arg1 : i32, i32, i32
  }
  func.func @transform_3(%arg0: i32, %arg1: i32) -> (i32, i32, i32) {
    %c0_i32 = arith.constant 0 : i32
    %c0_i32_0 = arith.constant 0 : i32
    return %arg0, %c0_i32, %arg1 : i32, i32, i32
  }
}

</mosaic_0001>

<llo_original>
// kernel: tpu_custom_call.1
$region0: #{tpu_custom_call.1}
  #allocation0 [shape = 'u32[]', space=smem, size = 0x4, offset = 0x4, fixed_abs, tag = 'smem constant byte address 0x4 - core index']
  #allocation1 [shape = 'u32[144,128]{1,0:T(1,128)}', space=vmem, size = 0x12000, scoped, tag = 'internal scratch']
  %s0 = inlined_call_operand.hbm [shape: f32[2,4,256], index: 0, kind: input, shape index: {}]
  %s1 = inlined_call_operand.hbm [shape: f32[2,4,256], index: 1, kind: output, shape index: {0}]
  %s2 = inlined_call_operand.hbm [shape: f32[2,1,256], index: 2, kind: output, shape index: {1}]
  %s3 = inlined_call_operand.hbm [shape: f32[2,1,256], index: 3, kind: output, shape index: {2}]
  %4 = xla_tuple %s1, %s2, %s3
  %s5 = sld [smem:[#allocation0]]
  $region57: #{tpu_custom_call.1} parent=0
    _
  %s7 = ssub.s32 1, %s5
  %s8 = scalar_select 0, %s7, %s5
  $region1: #{tpu_custom_call.1} parent=0
    #allocation2 [shape = 'u8[8192]{0}', space=vmem, size = 0x2000, scoped, tag = 'input window, operand 0']
    #allocation3 [shape = 's32[2]{0}', space=sflag, size = 0x8, scoped, tag = 'scoped memory for tpu_custom_call.1']
    #allocation4 [shape = 's32[2]{0}', space=sflag, size = 0x8, scoped, tag = 'scoped memory for tpu_custom_call.1']
    #allocation5 [shape = 'u8[8192]{0}', space=vmem, size = 0x2000, scoped, tag = 'output window, operand 0']
    #allocation6 [shape = 'u8[2048]{0}', space=vmem, size = 0x800, scoped, tag = 'output window, operand 1']
    #allocation7 [shape = 's32[2]{0}', space=sflag, size = 0x8, scoped, tag = 'scoped memory for tpu_custom_call.1']
    #allocation8 [shape = 'u8[2048]{0}', space=vmem, size = 0x800, scoped, tag = 'output window, operand 2']
    %9 = vsyncpa [#allocation3], 0
    %s10 = scalar_lea.sflag [#allocation3], 1
    %11 = vsyncpa %s10, 0
    %12 = vsyncpa [#allocation4], 0
    %s13 = scalar_lea.sflag [#allocation4], 1
    %14 = vsyncpa %s13, 0
    %15 = vsyncpa [#allocation7], 0
    %s16 = scalar_lea.sflag [#allocation7], 1
    %17 = vsyncpa %s16, 0
    loop: start=0, step=1, limit=4
    $region2: #{tpu_custom_call.1} parent=1 // loop_pre_header
      _
    $region3: #{tpu_custom_call.1} parent=1 // loop_header
      %s19 = sphi 0, %s23
      %p20 = scmp.ge.s32.totalorder %s19, 4
      %s26 = sphi 0, %s38
      %s27 = sphi 0, %s34
      %s28 = sphi 0, %s26
      %s29 = sphi 0, %s27
      %s30 = sphi 0, %s28
      %s31 = sphi 0, %s29
      %s43 = sphi 0, %s45
      %s46 = sphi 0, %s43
      %s47 = sphi 0, %s46
      %s63 = sphi 0, %s47
      %s71 = sphi 0, %s73
      %s74 = sphi 0, %s71
      %s75 = sphi 0, %s74
      %s91 = sphi 0, %s75
      %s99 = sphi 0, %s101
      %s102 = sphi 0, %s99
      %s103 = sphi 0, %s102
      %s119 = sphi 0, %s103
      %s127 = sphi 0, %s129
      %s130 = sphi 0, %s127
      %s131 = sphi 0, %s130
      %s147 = sphi 0, %s131
    $region4: #{tpu_custom_call.1} parent=1 // loop_header_branch
      %22 = sbr.rel (%p20) target = $region8
    $region5: #{tpu_custom_call.1} parent=1 // loop_body
      %s24 = ssub.s32 %s19, 1
      %s25 = ssub.s32 %s19, 2
      %s32 = sadd.s32 1, %s27
      %p33 = scmp.ge.s32.totalorder %s32, 1
      %s34 = scalar_select %p33, 0, %s32
      %s35 = sadd.s32 1, %s26
      %s36 = scalar_select %p33, %s35, %s26
      %p37 = scmp.ge.s32.totalorder %s36, 2
      %s38 = scalar_select %p37, 0, %s36
      %s39 = ssub.s32 %s26, %s38
      %s40 = ssub.s32 %s27, %s34
      %s41 = sor.u32 %s39, %s40
      %p42 = scmp.eq.s32.totalorder %s41, 0
      %s44 = sadd.s32 %s43, 1
      %s45 = scalar_select %p42, %s43, %s44
      %p48 = pneg %p42
      %p49 = scmp.eq.s32.totalorder %s19, 1
      %p50 = por %p48, %p49
      %p51 = scmp.ne.s32.totalorder %s43, %s46
      %p52 = scmp.eq.s32.totalorder %s19, 0
      %p53 = por %p51, %p52
      %p54 = scmp.ne.s32.totalorder %s43, %s46
      %p55 = scmp.eq.s32.totalorder %s24, 1
      %p56 = por %p54, %p55
      %p57 = scmp.ne.s32.totalorder %s46, %s47
      %p58 = scmp.eq.s32.totalorder %s24, 0
      %p59 = por %p57, %p58
      %p60 = scmp.ne.s32.totalorder %s46, %s47
      %p61 = scmp.eq.s32.totalorder %s25, 1
      %p62 = por %p60, %p61
      %p64 = scmp.ne.s32.totalorder %s47, %s63
      %p65 = scmp.eq.s32.totalorder %s25, 0
      %p66 = por %p64, %p65
      %s67 = ssub.s32 %s26, %s38
      %s68 = ssub.s32 %s27, %s34
      %s69 = sor.u32 %s67, %s68
      %p70 = scmp.eq.s32.totalorder %s69, 0
      %s72 = sadd.s32 %s71, 1
      %s73 = scalar_select %p70, %s71, %s72
      %p76 = pneg %p70
      %p77 = scmp.eq.s32.totalorder %s19, 1
      %p78 = por %p76, %p77
      %p79 = scmp.ne.s32.totalorder %s71, %s74
      %p80 = scmp.eq.s32.totalorder %s19, 0
      %p81 = por %p79, %p80
      %p82 = scmp.ne.s32.totalorder %s71, %s74
      %p83 = scmp.eq.s32.totalorder %s24, 1
      %p84 = por %p82, %p83
      %p85 = scmp.ne.s32.totalorder %s74, %s75
      %p86 = scmp.eq.s32.totalorder %s24, 0
      %p87 = por %p85, %p86
      %p88 = scmp.ne.s32.totalorder %s74, %s75
      %p89 = scmp.eq.s32.totalorder %s25, 1
      %p90 = por %p88, %p89
      %p92 = scmp.ne.s32.totalorder %s75, %s91
      %p93 = scmp.eq.s32.totalorder %s25, 0
      %p94 = por %p92, %p93
      %s95 = ssub.s32 %s26, %s38
      %s96 = ssub.s32 %s27, %s34
      %s97 = sor.u32 %s95, %s96
      %p98 = scmp.eq.s32.totalorder %s97, 0
      %s100 = sadd.s32 %s99, 1
      %s101 = scalar_select %p98, %s99, %s100
      %p104 = pneg %p98
      %p105 = scmp.eq.s32.totalorder %s19, 1
      %p106 = por %p104, %p105
      %p107 = scmp.ne.s32.totalorder %s99, %s102
      %p108 = scmp.eq.s32.totalorder %s19, 0
      %p109 = por %p107, %p108
      %p110 = scmp.ne.s32.totalorder %s99, %s102
      %p111 = scmp.eq.s32.totalorder %s24, 1
      %p112 = por %p110, %p111
      %p113 = scmp.ne.s32.totalorder %s102, %s103
      %p114 = scmp.eq.s32.totalorder %s24, 0
      %p115 = por %p113, %p114
      %p116 = scmp.ne.s32.totalorder %s102, %s103
      %p117 = scmp.eq.s32.totalorder %s25, 1
      %p118 = por %p116, %p117
      %p120 = scmp.ne.s32.totalorder %s103, %s119
      %p121 = scmp.eq.s32.totalorder %s25, 0
      %p122 = por %p120, %p121
      %s123 = ssub.s32 %s26, %s38
      %s124 = ssub.s32 %s27, %s34
      %s125 = sor.u32 %s123, %s124
      %p126 = scmp.eq.s32.totalorder %s125, 0
      %s128 = sadd.s32 %s127, 1
      %s129 = scalar_select %p126, %s127, %s128
      %p132 = pneg %p126
      %p133 = scmp.eq.s32.totalorder %s19, 1
      %p134 = por %p132, %p133
      %p135 = scmp.ne.s32.totalorder %s127, %s130
      %p136 = scmp.eq.s32.totalorder %s19, 0
      %p137 = por %p135, %p136
      %p138 = scmp.ne.s32.totalorder %s127, %s130
      %p139 = scmp.eq.s32.totalorder %s24, 1
      %p140 = por %p138, %p139
      %p141 = scmp.ne.s32.totalorder %s130, %s131
      %p142 = scmp.eq.s32.totalorder %s24, 0
      %p143 = por %p141, %p142
      %p144 = scmp.ne.s32.totalorder %s130, %s131
      %p145 = scmp.eq.s32.totalorder %s25, 1
      %p146 = por %p144, %p145
      %p148 = scmp.ne.s32.totalorder %s131, %s147
      %p149 = scmp.eq.s32.totalorder %s25, 0
      %p150 = por %p148, %p149
      %p151 = scmp.le.s32.totalorder 1, %s19
      %p152 = scmp.lt.s32.totalorder %s19, 3
      %p153 = pnand %p151, %p152
      %p154 = pneg %p153
      // Predicated region
      $region9: #{tpu_custom_call.1} parent=5 // pred_check
        _
      $region10: #{tpu_custom_call.1} parent=5 // pred_check_branch
        %156 = sbr.rel (%p153) target = $region12
      $region11: #{tpu_custom_call.1} parent=5 // pred_region
        %s157 = ssub.s32 %s19, 1
      $region12: #{tpu_custom_call.1} parent=5 // pred_fallthru
        _
      %p158 = scmp.lt.s32.totalorder %s19, 2
      // Predicated region
      $region13: #{tpu_custom_call.1} parent=5 // pred_check
        %p159 = pneg %p158
      $region14: #{tpu_custom_call.1} parent=5 // pred_check_branch
        %161 = sbr.rel (%p159) target = $region16
      $region15: #{tpu_custom_call.1} parent=5 // pred_region
        // Predicated region
        $region17: #{tpu_custom_call.1} parent=15 // pred_check
          %p162 = pneg %p53
        $region18: #{tpu_custom_call.1} parent=15 // pred_check_branch
          %164 = sbr.rel (%p162) target = $region20
        $region19: #{tpu_custom_call.1} parent=15 // pred_region
          %s165 = sand.u32 %s43, 1
          %s166 = scalar_lea.sflag [#allocation3], %s165
          %s167 = sand.u32 %s43, 1
          %s168 = smul.addr %s167, 8
          %s169 = scalar_lea.vmem [#allocation2], %s168
          %s170 = smul.u32 2, %s27
          %s172 = ssub.s32 128, 128
          %173 = vsyncadd %s166, %s172
          %s174 = smul.addr %s26, 2
          %s175 = sadd.s32 %s170, %s174
          %s176 = smul.addr %s175, 64
          %s177 = scalar_lea.hbm %s0, %s176
          %s179 = sshll.u32 %s169, 4
          %s180 = int_to_ptr.vmem [resolvable:$true] %s179
          %182 = dma.hbm_to_vmem [thread:$0]  %s177, 128, %s180, %s166
        $region20: #{tpu_custom_call.1} parent=15 // pred_fallthru
          _
      $region16: #{tpu_custom_call.1} parent=5 // pred_fallthru
        _
      %p183 = scmp.le.s32.totalorder 1, %s19
      %p184 = scmp.lt.s32.totalorder %s19, 3
      %p185 = pnand %p183, %p184
      %p186 = pneg %p185
      // Predicated region
      $region21: #{tpu_custom_call.1} parent=5 // pred_check
        _
      $region22: #{tpu_custom_call.1} parent=5 // pred_check_branch
        %188 = sbr.rel (%p185) target = $region24
      $region23: #{tpu_custom_call.1} parent=5 // pred_region
        %s189 = ssub.s32 %s19, 1
        %s190 = sand.u32 %s46, 1
        %s191 = scalar_lea.sflag [#allocation3], %s190
        %s192 = sand.u32 %s46, 1
        %s193 = smul.addr %s192, 8
        %s194 = scalar_lea.vmem [#allocation2], %s193
        // Predicated region
        $region25: #{tpu_custom_call.1} parent=23 // pred_check
          %p195 = pneg %p59
        $region26: #{tpu_custom_call.1} parent=23 // pred_check_branch
          %197 = sbr.rel (%p195) target = $region28
        $region27: #{tpu_custom_call.1} parent=23 // pred_region
          %198 = dma.done %s191, 128
        $region28: #{tpu_custom_call.1} parent=23 // pred_fallthru
          _
        %s199 = sand.u32 %s46, 1
        %s200 = scalar_lea.sflag [#allocation3], %s199
        %s201 = sand.u32 %s46, 1
        %s202 = smul.addr %s201, 8
        %s203 = scalar_lea.vmem [#allocation2], %s202
        %p204 = pneg %p59
        %p205 = pneg %p56
        %p206 = pneg %p87
        %p207 = pneg %p84
        %s208 = sand.u32 %s74, 1
        %s209 = scalar_lea.sflag [#allocation4], %s208
        %s210 = sand.u32 %s74, 1
        %s211 = smul.addr %s210, 8
        %s212 = scalar_lea.vmem [#allocation5], %s211
        %p213 = pneg %p115
        %p214 = pneg %p112
        %s215 = sand.u32 %s24, 1
        %s216 = scalar_lea.sflag [#allocation7], %s215
        %s217 = sand.u32 %s102, 1
        %s218 = smul.addr %s217, 2
        %s219 = scalar_lea.vmem [#allocation6], %s218
        %p220 = pneg %p143
        %p221 = pneg %p140
        %s222 = sand.u32 %s24, 1
        %s223 = scalar_lea.sflag [#allocation7], %s222
        %s224 = sand.u32 %s130, 1
        %s225 = smul.addr %s224, 2
        %s226 = scalar_lea.vmem [#allocation8], %s225
        %s227 = smul.u32 2, %s29
        %s228 = smul.u32 2, %s29
        %s229 = smul.u32 2, %s29
        %s230 = smul.u32 2, %s29
        %v231 = vld [vmem:[%s194] sm:$0xff]
        %v233 = vcombine.high %v231, %v231
        %vm235 = vcmask 1043456
        %v236 = vsel %vm235, %v231, 0.0
        %v237 = vrot.slane %v236, 4
        %v238 = vadd.f32 %v236, %v237
        %v239 = vrot.slane %v238, 2
        %v240 = vadd.f32 %v238, %v239
        %v241 = vrot.slane %v240, 1
        %v242 = vadd.f32 %v240, %v241
        %v243 = vsel %vm235, %v233, 0.0
        %v244 = vrot.slane %v243, 4
        %v245 = vadd.f32 %v243, %v244
        %v246 = vrot.slane %v245, 2
        %v247 = vadd.f32 %v245, %v246
        %v248 = vrot.slane %v247, 1
        %v249 = vadd.f32 %v247, %v248
        %v250 = vrcp.pop 4.0
        %v251 = vmul.f32 %v242, %v250
        %v252 = vmul.f32 %v249, %v250
        %v255 = vcombine.low %v251, %v252
        %v257 = vsub.f32 %v231, %v255
        %v258 = vmul.f32 %v257, %v257
        %v260 = vcombine.high %v258, %v258
        %v262 = vsel %vm235, %v258, 0.0
        %v263 = vrot.slane %v262, 4
        %v264 = vadd.f32 %v262, %v263
        %v265 = vrot.slane %v264, 2
        %v266 = vadd.f32 %v264, %v265
        %v267 = vrot.slane %v266, 1
        %v268 = vadd.f32 %v266, %v267
        %v269 = vsel %vm235, %v260, 0.0
        %v270 = vrot.slane %v269, 4
        %v271 = vadd.f32 %v269, %v270
        %v272 = vrot.slane %v271, 2
        %v273 = vadd.f32 %v271, %v272
        %v274 = vrot.slane %v273, 1
        %v275 = vadd.f32 %v273, %v274
        %v276 = vmul.f32 %v268, 0.33333334
        %v277 = vmul.f32 %v275, 0.33333334
        %v278 = vrsqrt.pop %v276
        %v279 = vmul.f32 %v276, %v278
        %vm280 = vcmp.eq.f32.partialorder %v276, inf
        %v281 = vsel %vm280, %v276, %v279
        %vm282 = vcmp.eq.f32.partialorder %v276, 0.0
        %v283 = vand.u32 %v276, 2147483648
        %v284 = vsel %vm282, %v283, %v281
        %v285 = vrsqrt.pop %v277
        %v286 = vmul.f32 %v277, %v285
        %vm287 = vcmp.eq.f32.partialorder %v277, inf
        %v288 = vsel %vm287, %v277, %v286
        %vm289 = vcmp.eq.f32.partialorder %v277, 0.0
        %v290 = vand.u32 %v277, 2147483648
        %v291 = vsel %vm289, %v290, %v288
        %v292 = vadd.f32 %v284, 1e-05
        %v293 = vadd.f32 %v291, 1e-05
        %v294 = vrcp.pop %v292
        %v295 = vrcp.pop %v293
        %v298 = vcombine.low %v294, %v295
        %v300 = vmul.f32 %v257, %v298
        %301 = vst [vmem:[%s212] sm:$0xff] %v300
        %v303 = vunpack.c.l.s4 1966171168
        %v304 = vunpack.c.0.s8 %v303
        %v305 = vlaneseq
        %v306 = vshrl.u32 %v305, 7
        %v307 = vsub.s32 %v304, %v306
        %v308 = vrot.slane %v255, %v307
        %v310 = vunpack.c.l.s4 1966171168
        %v311 = vunpack.c.0.s8 %v310
        %v312 = vlaneseq
        %v313 = vshrl.u32 %v312, 7
        %v314 = vsub.s32 %v311, %v313
        %v315 = vrot.slane %v308, %v314
        %v317 = vlaneseq
        %vm318 = vcmp.ge.s32.totalorder %v317, 0
        %vm319 = vcmp.lt.s32.totalorder %v317, 256
        %vm320 = vmand %vm318, %vm319
        %321 = vst.msk [vmem:[%s219] sm:$0x3] %vm320, %v315
        %v324 = vcombine.low %v284, %v291
        %v326 = vunpack.c.l.s4 1966171168
        %v327 = vunpack.c.0.s8 %v326
        %v328 = vlaneseq
        %v329 = vshrl.u32 %v328, 7
        %v330 = vsub.s32 %v327, %v329
        %v331 = vrot.slane %v324, %v330
        %v333 = vunpack.c.l.s4 1966171168
        %v334 = vunpack.c.0.s8 %v333
        %v335 = vlaneseq
        %v336 = vshrl.u32 %v335, 7
        %v337 = vsub.s32 %v334, %v336
        %v338 = vrot.slane %v331, %v337
        %340 = vst.msk [vmem:[%s226] sm:$0x3] %vm320, %v338
        %s341 = sand.u32 %s74, 1
        %s342 = scalar_lea.sflag [#allocation4], %s341
        %s343 = sand.u32 %s74, 1
        %s344 = smul.addr %s343, 8
        %s345 = scalar_lea.vmem [#allocation5], %s344
        %s346 = sand.u32 %s24, 1
        %s347 = scalar_lea.sflag [#allocation7], %s346
        %s348 = sand.u32 %s102, 1
        %s349 = smul.addr %s348, 2
        %s350 = scalar_lea.vmem [#allocation6], %s349
        %s351 = sand.u32 %s24, 1
        %s352 = scalar_lea.sflag [#allocation7], %s351
        %s353 = sand.u32 %s130, 1
        %s354 = smul.addr %s353, 2
        %s355 = scalar_lea.vmem [#allocation8], %s354
        // Predicated region
        $region29: #{tpu_custom_call.1} parent=23 // pred_check
          %p356 = pneg %p84
        $region30: #{tpu_custom_call.1} parent=23 // pred_check_branch
          %358 = sbr.rel (%p356) target = $region32
        $region31: #{tpu_custom_call.1} parent=23 // pred_region
          %s359 = smul.u32 2, %s29
          %s361 = ssub.s32 128, 128
          %362 = vsyncadd %s342, %s361
          %s363 = smul.addr %s28, 2
          %s364 = sadd.s32 %s359, %s363
          %s365 = smul.addr %s364, 64
          %s366 = scalar_lea.hbm %s1, %s365
          %s368 = sshll.u32 %s345, 4
          %s369 = int_to_ptr.vmem [resolvable:$true] %s368
          %371 = dma.vmem_to_hbm [thread:$0]  %s369, 128, %s366, %s342
        $region32: #{tpu_custom_call.1} parent=23 // pred_fallthru
          _
        // Predicated region
        $region33: #{tpu_custom_call.1} parent=23 // pred_check
          %p372 = pneg %p112
        $region34: #{tpu_custom_call.1} parent=23 // pred_check_branch
          %374 = sbr.rel (%p372) target = $region36
        $region35: #{tpu_custom_call.1} parent=23 // pred_region
          %s375 = smul.u32 2, %s29
          %s377 = ssub.s32 32, 32
          %378 = vsyncadd %s347, %s377
          %s379 = smul.addr %s28, 2
          %s380 = sadd.s32 %s375, %s379
          %s381 = smul.addr %s380, 16
          %s382 = scalar_lea.hbm %s2, %s381
          %s384 = sshll.u32 %s350, 4
          %s385 = int_to_ptr.vmem [resolvable:$true] %s384
          %387 = dma.vmem_to_hbm [thread:$0]  %s385, 32, %s382, %s347
        $region36: #{tpu_custom_call.1} parent=23 // pred_fallthru
          _
        // Predicated region
        $region37: #{tpu_custom_call.1} parent=23 // pred_check
          %p388 = pneg %p140
        $region38: #{tpu_custom_call.1} parent=23 // pred_check_branch
          %390 = sbr.rel (%p388) target = $region40
        $region39: #{tpu_custom_call.1} parent=23 // pred_region
          %s391 = smul.u32 2, %s29
          %s393 = ssub.s32 32, 32
          %394 = vsyncadd %s352, %s393
          %s395 = smul.addr %s28, 2
          %s396 = sadd.s32 %s391, %s395
          %s397 = smul.addr %s396, 16
          %s398 = scalar_lea.hbm %s3, %s397
          %s400 = sshll.u32 %s355, 4
          %s401 = int_to_ptr.vmem [resolvable:$true] %s400
          %403 = dma.vmem_to_hbm [thread:$0]  %s401, 32, %s398, %s352
        $region40: #{tpu_custom_call.1} parent=23 // pred_fallthru
          _
      $region24: #{tpu_custom_call.1} parent=5 // pred_fallthru
        _
      %p404 = scmp.le.s32.totalorder 2, %s19
      // Predicated region
      $region41: #{tpu_custom_call.1} parent=5 // pred_check
        %p405 = pneg %p404
      $region42: #{tpu_custom_call.1} parent=5 // pred_check_branch
        %407 = sbr.rel (%p405) target = $region44
      $region43: #{tpu_custom_call.1} parent=5 // pred_region
        %s408 = ssub.s32 %s19, 2
        // Predicated region
        $region45: #{tpu_custom_call.1} parent=43 // pred_check
          %p409 = pneg %p90
        $region46: #{tpu_custom_call.1} parent=43 // pred_check_branch
          %411 = sbr.rel (%p409) target = $region48
        $region47: #{tpu_custom_call.1} parent=43 // pred_region
          %s412 = sand.u32 %s75, 1
          %s413 = scalar_lea.sflag [#allocation4], %s412
          %s414 = sand.u32 %s75, 1
          %s415 = smul.addr %s414, 8
          %s416 = scalar_lea.vmem [#allocation5], %s415
          %417 = dma.done %s413, 128
        $region48: #{tpu_custom_call.1} parent=43 // pred_fallthru
          _
        // Predicated region
        $region49: #{tpu_custom_call.1} parent=43 // pred_check
          %p418 = pneg %p118
        $region50: #{tpu_custom_call.1} parent=43 // pred_check_branch
          %420 = sbr.rel (%p418) target = $region52
        $region51: #{tpu_custom_call.1} parent=43 // pred_region
          %s421 = sand.u32 %s25, 1
          %s422 = scalar_lea.sflag [#allocation7], %s421
          %s423 = sand.u32 %s103, 1
          %s424 = smul.addr %s423, 2
          %s425 = scalar_lea.vmem [#allocation6], %s424
          %426 = dma.done %s422, 32
        $region52: #{tpu_custom_call.1} parent=43 // pred_fallthru
          _
        // Predicated region
        $region53: #{tpu_custom_call.1} parent=43 // pred_check
          %p427 = pneg %p146
        $region54: #{tpu_custom_call.1} parent=43 // pred_check_branch
          %429 = sbr.rel (%p427) target = $region56
        $region55: #{tpu_custom_call.1} parent=43 // pred_region
          %s430 = sand.u32 %s25, 1
          %s431 = scalar_lea.sflag [#allocation7], %s430
          %s432 = sand.u32 %s131, 1
          %s433 = smul.addr %s432, 2
          %s434 = scalar_lea.vmem [#allocation8], %s433
          %435 = dma.done %s431, 32
        $region56: #{tpu_custom_call.1} parent=43 // pred_fallthru
          _
      $region44: #{tpu_custom_call.1} parent=5 // pred_fallthru
        _
    $region6: #{tpu_custom_call.1} parent=1 // loop_footer
      %s23 = sadd.s32 1, %s19
    $region7: #{tpu_custom_call.1} parent=1 // loop_footer_branch
      %18 = sbr.rel target = $region3
    $region8: #{tpu_custom_call.1} parent=1 // loop_exit
      _
    %436 = vsyncpa [#allocation3], 1
    %s437 = scalar_lea.sflag [#allocation3], 1
    %438 = vsyncpa %s437, 1
    %439 = vsyncpa [#allocation4], 1
    %s440 = scalar_lea.sflag [#allocation4], 1
    %441 = vsyncpa %s440, 1
    %442 = vsyncpa [#allocation7], 1
    %s443 = scalar_lea.sflag [#allocation7], 1
    %444 = vsyncpa %s443, 1

</llo_original>
